<compile_context>
chip_gen: v7x
topology: tpu7x:2x2x1
jax: 0.10.0
libtpu: 0.0.40
codegen_flags: <defaults>
</compile_context>

<pallas_src>
import jax
import jax.numpy as jnp
from jax.experimental import pallas as pl
from jax.experimental.pallas import tpu as pltpu


def _make_swiglu_kernel(approx_sigmoid: bool):
    def kernel(a_ref, g_ref, o_ref):
        # a_ref, g_ref, o_ref: (TR, TH) lane-aligned tiles.
        a = a_ref[...].astype(jnp.float32)
        g = g_ref[...].astype(jnp.float32)
        e = jnp.exp(-g)  # EUP slot
        if approx_sigmoid:
            sig = pl.reciprocal(1.0 + e, approx=True)  # EUP slot
        else:
            sig = 1.0 / (1.0 + e)
        o_ref[...] = (a * g * sig).astype(o_ref.dtype)

    return kernel


def _default_vmem_limit_bytes() -> int:
    # ~80% of physical VMEM when queryable (v7x: ~51 MiB of 64; v6e/v5e capped
    # at 96 MiB to leave headroom for the surrounding XLA program).
    try:
        cap = int(pltpu.get_tpu_info().vmem_capacity_bytes)
        return min(int(cap * 0.8), 96 * 1024 * 1024)
    except Exception:
        return 48 * 1024 * 1024


def _round_down_mult(v: int, m: int) -> int:
    return (v // m) * m


def swiglu(
    x,
    *,
    row_tile_max: int = 512,
    hidden_tile_max: int = 2048,
    vmem_limit_bytes: int | None = None,
    approx_sigmoid: bool = False,
):
    """out = a * silu(gate), where a, gate = split(x, 2, axis=-1)."""
    *lead, H = x.shape
    assert H % 2 == 0, "last dim must be even for chunk(2, dim=-1)"
    Ho = H // 2

    rows = 1
    for d in lead:
        rows *= d
    x2 = x.reshape(rows, H)

    if vmem_limit_bytes is None:
        vmem_limit_bytes = _default_vmem_limit_bytes()

    if Ho % 128 == 0:
        # Lane-aligned split: pass x twice; the gate half is selected by a
        # block-index offset of Ho // TH along the hidden axis.
        a_arr, g_arr = x2, x2
        Hb = Ho          # hidden extent tiled per half
        pad = 0
        gate_half_offset = Ho
    else:
        # Pad each half to a 128-lane multiple in the wrapper (demo-sized /
        # unusual hiddens only) so the kernel never does unaligned lane work.
        a_arr, g_arr = jnp.split(x2, 2, axis=-1)
        Hb = ((Ho + 127) // 128) * 128
        pad = Hb - Ho
        a_arr = jnp.pad(a_arr, ((0, 0), (0, pad)))
        g_arr = jnp.pad(g_arr, ((0, 0), (0, pad)))
        gate_half_offset = 0

    # --- hidden tile: multiple of 128 lanes, divides Hb, capped. -------------
    n128 = Hb // 128
    d_max = max(1, min(n128, hidden_tile_max // 128))
    d = next(dd for dd in range(d_max, 0, -1) if n128 % dd == 0)
    TH = 128 * d
    g_off_blocks = gate_half_offset // TH  # Ho % TH == 0 on the aligned path

    # --- row tile: derived from the VMEM budget (6 double-buffered slabs),
    #     25% headroom for compiler internal scratch, capped at row_tile_max.
    itemsize = jnp.dtype(x.dtype).itemsize
    budget = int(vmem_limit_bytes * 0.75)
    tr_budget = max(8, budget // (6 * TH * itemsize))
    TR = max(8, _round_down_mult(min(tr_budget, row_tile_max), 8))
    if rows <= TR:
        TR = rows  # full-extent block (allowed even if not a multiple of 8)

    grid = (pl.cdiv(rows, TR), Hb // TH)

    cost = pl.CostEstimate(
        flops=int(4 * rows * Ho),
        transcendentals=int(rows * Ho),
        bytes_accessed=int(rows * (H + Ho) * itemsize),
    )
    compiler_params = pltpu.CompilerParams(
        dimension_semantics=("parallel", "parallel"),
        vmem_limit_bytes=vmem_limit_bytes,
    )

    out2 = pl.pallas_call(
        _make_swiglu_kernel(approx_sigmoid),
        out_shape=jax.ShapeDtypeStruct((rows, Hb), x.dtype),
        grid=grid,
        in_specs=[
            pl.BlockSpec((TR, TH), lambda i, j: (i, j)),                  # a half
            pl.BlockSpec((TR, TH), lambda i, j: (i, j + g_off_blocks)),   # gate half
        ],
        out_specs=pl.BlockSpec((TR, TH), lambda i, j: (i, j)),
        compiler_params=compiler_params,
        cost_estimate=cost,
    )(a_arr, g_arr)

    if pad:
        out2 = out2[:, :Ho]
    return out2.reshape(*lead, Ho)


if __name__ == "__main__":
    key = jax.random.PRNGKey(0)
    k1, k2, k3, k4 = jax.random.split(key, 4)

    def ref_swiglu(x):
        a, gate = jnp.split(x, 2, axis=-1)
        return a * (gate * jax.nn.sigmoid(gate))

    # 1) Lane-aligned path (Ho = 128), default tiling.
    x1 = jax.random.normal(k1, (2, 8, 256), dtype=jnp.float32)
    out = jax.block_until_ready(swiglu(x1))
    ref = ref_swiglu(x1)
    assert out.shape == ref.shape
    assert jnp.allclose(out, ref, atol=1e-5, rtol=1e-5), float(jnp.max(jnp.abs(out - ref)))

    # 2) Unaligned hidden (Ho = 32) -> wrapper-side pad-to-128 path.
    x2 = jax.random.normal(k2, (2, 8, 64), dtype=jnp.float32)
    out = jax.block_until_ready(swiglu(x2))
    ref = ref_swiglu(x2)
    assert out.shape == ref.shape
    assert jnp.allclose(out, ref, atol=1e-5, rtol=1e-5), float(jnp.max(jnp.abs(out - ref)))

    # 3) Multi-block 2-D grid with a partial last row block (rows=12, Ho=256,
    #    TR=8, TH=128 -> grid (2, 2)).
    x3 = jax.random.normal(k3, (3, 4, 512), dtype=jnp.float32)
    out = jax.block_until_ready(swiglu(x3, row_tile_max=8, hidden_tile_max=128))
    ref = ref_swiglu(x3)
    assert out.shape == ref.shape
    assert jnp.allclose(out, ref, atol=1e-5, rtol=1e-5), float(jnp.max(jnp.abs(out - ref)))

    # 4) bf16 input (f32 compute inside, cast on store).
    x4 = jax.random.normal(k4, (2, 8, 256), dtype=jnp.bfloat16)
    out = jax.block_until_ready(swiglu(x4)).astype(jnp.float32)
    ref = ref_swiglu(x4.astype(jnp.float32))
    assert out.shape == ref.shape
    assert jnp.allclose(out, ref, atol=5e-2, rtol=5e-2), float(jnp.max(jnp.abs(out - ref)))

    # 5) Approx (EUP) sigmoid path also compiles and is close.
    out = jax.block_until_ready(swiglu(x1, approx_sigmoid=True))
    ref = ref_swiglu(x1)
    assert jnp.allclose(out, ref, atol=2e-2, rtol=2e-2), float(jnp.max(jnp.abs(out - ref)))

    print("KERNEL_OK")
</pallas_src>

<mosaic_0001>
module attributes {stable_mosaic.version = 11 : i64} {
  func.func @kernel(%arg0: i32, %arg1: i32, %arg2: memref<16x128xf32, #tpu.memory_space<vmem>>, %arg3: memref<16x128xf32, #tpu.memory_space<vmem>>, %arg4: memref<16x128xf32, #tpu.memory_space<vmem>>) attributes {dimension_semantics = [#tpu.dimension_semantics<parallel>, #tpu.dimension_semantics<parallel>], iteration_bounds = array<i64: 1, 1>, scalar_prefetch = 0 : i64, scratch_operands = 0 : i64, tpu.core_type = #tpu.core_type<tc>, window_params = [{transform_indices = @transform_0, window_bounds = array<i64: 16, 128>}, {transform_indices = @transform_1, window_bounds = array<i64: 16, 128>}, {transform_indices = @transform_2, window_bounds = array<i64: 16, 128>}]} {
    %c0 = arith.constant 0 : index
    %c0_0 = arith.constant 0 : index
    %0 = vector.load %arg2[%c0, %c0_0] : memref<16x128xf32, #tpu.memory_space<vmem>>, vector<16x128xf32>
    %c0_1 = arith.constant 0 : index
    %c0_2 = arith.constant 0 : index
    %1 = vector.load %arg3[%c0_1, %c0_2] : memref<16x128xf32, #tpu.memory_space<vmem>>, vector<16x128xf32>
    %cst = arith.constant 0.000000e+00 : f32
    %2 = vector.broadcast %cst : f32 to vector<16x128xf32>
    %3 = arith.subf %2, %1 : vector<16x128xf32>
    %4 = math.exp %3 : vector<16x128xf32>
    %cst_3 = arith.constant 1.000000e+00 : f32
    %5 = vector.broadcast %cst_3 : f32 to vector<16x128xf32>
    %6 = arith.addf %5, %4 : vector<16x128xf32>
    %cst_4 = arith.constant 1.000000e+00 : f32
    %7 = vector.broadcast %cst_4 : f32 to vector<16x128xf32>
    %8 = arith.divf %7, %6 : vector<16x128xf32>
    %9 = arith.mulf %0, %1 : vector<16x128xf32>
    %10 = arith.mulf %9, %8 : vector<16x128xf32>
    %c0_5 = arith.constant 0 : index
    %c0_6 = arith.constant 0 : index
    %11 = vector.load %arg4[%c0_5, %c0_6] : memref<16x128xf32, #tpu.memory_space<vmem>>, vector<16x128xf32>
    tpu.vector_store %arg4[%c0_5, %c0_6], %10 {strides = array<i32>} : memref<16x128xf32, #tpu.memory_space<vmem>>, vector<16x128xf32>,
    return
  }
  func.func @transform_0(%arg0: i32, %arg1: i32) -> (i32, i32) {
    %c0_i32 = arith.constant 0 : i32
    return %arg0, %arg1 : i32, i32
  }
  func.func @transform_1(%arg0: i32, %arg1: i32) -> (i32, i32) {
    %c1_i32 = arith.constant 1 : i32
    %0 = arith.addi %arg1, %c1_i32 : i32
    %c0_i32 = arith.constant 0 : i32
    return %arg0, %0 : i32, i32
  }
  func.func @transform_2(%arg0: i32, %arg1: i32) -> (i32, i32) {
    %c0_i32 = arith.constant 0 : i32
    return %arg0, %arg1 : i32, i32
  }
}

</mosaic_0001>

<llo_original>
// kernel: tpu_custom_call.1
$region0: #{tpu_custom_call.1}
  #allocation0 [shape = 'u32[]', space=smem, size = 0x4, offset = 0x4, fixed_abs, tag = 'smem constant byte address 0x4 - core index']
  #allocation1 [shape = 'u32[144,128]{1,0:T(1,128)}', space=vmem, size = 0x12000, scoped, tag = 'internal scratch']
  %s0 = inlined_call_operand.hbm [shape: f32[16,256], index: 0, kind: input, shape index: {}]
  %s1 = inlined_call_operand.hbm [shape: f32[16,256], index: 1, kind: input, shape index: {}]
  %s2 = inlined_call_operand.hbm [shape: f32[16,128], index: 2, kind: output, shape index: {}]
  %s3 = sld [smem:[#allocation0]]
  $region26: #{tpu_custom_call.1} parent=0
    _
  %s5 = ssub.s32 1, %s3
  %s6 = scalar_select 0, %s5, %s3
  $region1: #{tpu_custom_call.1} parent=0
    #allocation2 [shape = 'u8[8192]{0}', space=vmem, size = 0x2000, scoped, tag = 'input window, operand 0, single buffered']
    #allocation3 [shape = 's32[1]{0}', space=sflag, size = 0x4, scoped, tag = 'scoped memory for tpu_custom_call.1']
    #allocation4 [shape = 's32[1]{0}', space=sflag, size = 0x4, scoped, tag = 'scoped memory for tpu_custom_call.1']
    #allocation5 [shape = 'u8[8192]{0}', space=vmem, size = 0x2000, scoped, tag = 'input window, operand 1, single buffered']
    #allocation6 [shape = 's32[1]{0}', space=sflag, size = 0x4, scoped, tag = 'scoped memory for tpu_custom_call.1']
    #allocation7 [shape = 'u8[8192]{0}', space=vmem, size = 0x2000, scoped, tag = 'output window, operand 0, single buffered']
    %7 = vsyncpa [#allocation3], 0
    %8 = vsyncpa [#allocation6], 0
    %9 = vsyncpa [#allocation4], 0
    // Predicated region
    $region2: #{tpu_custom_call.1} parent=1 // pred_check
      _
    $region3: #{tpu_custom_call.1} parent=1 // pred_check_branch
      %11 = sbr.rel (0) target = $region5
    $region4: #{tpu_custom_call.1} parent=1 // pred_region
      %s13 = ssub.s32 256, 256
      %14 = vsyncadd [#allocation3], %s13
      %s15 = sshll.u32 [#allocation2], 4
      %s16 = int_to_ptr.vmem [resolvable:$true] %s15
      %21 = dma.hbm_to_vmem [thread:$0]  %s0, 256, %s16, [#allocation3], 256, 128, 8
    $region5: #{tpu_custom_call.1} parent=1 // pred_fallthru
      _
    // Predicated region
    $region6: #{tpu_custom_call.1} parent=1 // pred_check
      _
    $region7: #{tpu_custom_call.1} parent=1 // pred_check_branch
      %23 = sbr.rel (0) target = $region9
    $region8: #{tpu_custom_call.1} parent=1 // pred_region
      %s24 = sadd.s32 0, 1
      %s26 = ssub.s32 256, 256
      %27 = vsyncadd [#allocation6], %s26
      %s28 = smul.addr %s24, 128
      %s29 = scalar_lea.hbm %s1, %s28
      %s30 = sshll.u32 [#allocation5], 4
      %s31 = int_to_ptr.vmem [resolvable:$true] %s30
      %36 = dma.hbm_to_vmem [thread:$0]  %s29, 256, %s31, [#allocation6], 256, 128, 8
    $region9: #{tpu_custom_call.1} parent=1 // pred_fallthru
      _
    // Predicated region
    $region10: #{tpu_custom_call.1} parent=1 // pred_check
      _
    $region11: #{tpu_custom_call.1} parent=1 // pred_check_branch
      %38 = sbr.rel (0) target = $region13
    $region12: #{tpu_custom_call.1} parent=1 // pred_region
      %39 = dma.done [#allocation3], 256
    $region13: #{tpu_custom_call.1} parent=1 // pred_fallthru
      _
    // Predicated region
    $region14: #{tpu_custom_call.1} parent=1 // pred_check
      _
    $region15: #{tpu_custom_call.1} parent=1 // pred_check_branch
      %41 = sbr.rel (0) target = $region17
    $region16: #{tpu_custom_call.1} parent=1 // pred_region
      %42 = dma.done [#allocation6], 256
    $region17: #{tpu_custom_call.1} parent=1 // pred_fallthru
      _
    %s43 = sadd.s32 0, 1
    %v44 = vld [vmem:[#allocation2] sm:$0xff]
    %v45 = vld [vmem:[#allocation2 + $0x8] sm:$0xff]
    %v46 = vld [vmem:[#allocation5] sm:$0xff]
    %v47 = vld [vmem:[#allocation5 + $0x8] sm:$0xff]
    %v48 = vsub.f32 0.0, %v46
    %v49 = vsub.f32 0.0, %v47
    %v50 = vmul.f32 %v48, 1.442695
    %v51 = vpow.pop %v50
    %v52 = vmul.f32 %v49, 1.442695
    %v53 = vpow.pop %v52
    %v54 = vadd.f32 %v51, 1.0
    %v55 = vadd.f32 %v53, 1.0
    %v56 = vrcp.pop %v54
    %v57 = vmul.f32 1.0, %v56
    %v58 = vrcp.pop %v55
    %v59 = vmul.f32 1.0, %v58
    %v60 = vmul.f32 %v44, %v46
    %v61 = vmul.f32 %v45, %v47
    %v62 = vmul.f32 %v60, %v57
    %v63 = vmul.f32 %v61, %v59
    %64 = vst [vmem:[#allocation7] sm:$0xff] %v62
    %65 = vst [vmem:[#allocation7 + $0x8] sm:$0xff] %v63
    // Predicated region
    $region18: #{tpu_custom_call.1} parent=1 // pred_check
      _
    $region19: #{tpu_custom_call.1} parent=1 // pred_check_branch
      %67 = sbr.rel (0) target = $region21
    $region20: #{tpu_custom_call.1} parent=1 // pred_region
      %s69 = ssub.s32 256, 256
      %70 = vsyncadd [#allocation4], %s69
      %s71 = sshll.u32 [#allocation7], 4
      %s72 = int_to_ptr.vmem [resolvable:$true] %s71
      %77 = dma.vmem_to_hbm [thread:$0]  %s72, 256, %s2, [#allocation4], 128, 128, 8
    $region21: #{tpu_custom_call.1} parent=1 // pred_fallthru
      _
    // Predicated region
    $region22: #{tpu_custom_call.1} parent=1 // pred_check
      _
    $region23: #{tpu_custom_call.1} parent=1 // pred_check_branch
      %79 = sbr.rel (0) target = $region25
    $region24: #{tpu_custom_call.1} parent=1 // pred_region
      %80 = dma.done [#allocation4], 256
    $region25: #{tpu_custom_call.1} parent=1 // pred_fallthru
      _
    %81 = vsyncpa [#allocation3], 1
    %82 = vsyncpa [#allocation6], 1
    %83 = vsyncpa [#allocation4], 1

</llo_original>
